<compile_context>
chip_gen: v7x
topology: tpu7x:2x2x1
jax: 0.10.0
libtpu: 0.0.40
codegen_flags: <defaults>
</compile_context>

<pallas_src>
import jax
import jax.numpy as jnp
from jax import lax
from jax.experimental import pallas as pl
from jax.experimental.pallas import tpu as pltpu


def _cdiv(a, b):
    return (a + b - 1) // b


def _round_up(x, m):
    return ((x + m - 1) // m) * m


def critic_kernel(x_ref, w1_ref, b1_ref, w2_ref, b2_ref, o_ref):
    # fc1 on the MXU (f32 accumulate); bias + ReLU on the VPU.
    h = jnp.dot(x_ref[...], w1_ref[...], preferred_element_type=jnp.float32)
    h = jnp.maximum(h + b1_ref[...], 0.0)
    # fc2 with the batch on the lane axis:
    #   (1, H) contracted with (tile_b, H) over H  ->  (1, tile_b)
    out = lax.dot_general(
        w2_ref[...], h,
        dimension_numbers=(((1,), (1,)), ((), ())),
        preferred_element_type=jnp.float32)
    # b2 is a scalar read from SMEM -> scalar-broadcast add.
    o_ref[...] = (out + b2_ref[0, 0]).astype(o_ref.dtype)


def critic_net_forward(x, w1, b1, w2, b2, *, tile_b=4096):
    """Forward pass of CriticNet.

    x:  (B, num_inputs) float32
    w1: (num_inputs, hidden) float32   (transposed vs PyTorch Linear.weight)
    b1: (hidden,) float32
    w2: (hidden, 1) float32
    b2: (1,) float32
    Returns (B, 1) float32.
    """
    B, num_inputs = x.shape
    hidden = w1.shape[1]

    # Lane-dense batch tile (multiple of 128); clamp so the grid has >= 2 steps
    # when the batch allows it (v7x megacore gets both TCs busy).
    tile_b = min(tile_b, _round_up(_cdiv(B, 2), 128))
    tile_b = max(128, _round_up(tile_b, 128))
    num_tiles = _cdiv(B, tile_b)
    B_pad = num_tiles * tile_b

    x = x.astype(jnp.float32)
    w1 = w1.astype(jnp.float32)
    b1_row = b1.reshape(1, hidden).astype(jnp.float32)
    w2_row = w2.reshape(1, hidden).astype(jnp.float32)   # fc2 weight as a row
    b2_s = b2.reshape(1, 1).astype(jnp.float32)

    flops = 2 * B * num_inputs * hidden + 2 * B * hidden
    bytes_accessed = (x.size + w1.size + b1_row.size + w2_row.size + b2_s.size
                      + B_pad) * 4

    out = pl.pallas_call(
        critic_kernel,
        out_shape=jax.ShapeDtypeStruct((1, B_pad), jnp.float32),
        grid=(num_tiles,),
        in_specs=[
            # Streamed batch tiles of x (last tile may be partial).
            pl.BlockSpec((tile_b, num_inputs), lambda i: (i, 0)),
            # Weights / fc1 bias: constant index_map -> fetched once, resident.
            pl.BlockSpec((num_inputs, hidden), lambda i: (0, 0)),
            pl.BlockSpec((1, hidden), lambda i: (0, 0)),
            pl.BlockSpec((1, hidden), lambda i: (0, 0)),
            # fc2 bias scalar lives in SMEM.
            pl.BlockSpec(memory_space=pltpu.MemorySpace.SMEM),
        ],
        # Batch on the lane axis: each grid step writes a disjoint, lane-dense
        # (1, tile_b) window -> unmasked stores, 4 B of HBM per batch row.
        out_specs=pl.BlockSpec((1, tile_b), lambda i: (0, i)),
        compiler_params=pltpu.CompilerParams(
            dimension_semantics=("parallel",),   # v7x megacore sharding
        ),
        cost_estimate=pl.CostEstimate(
            flops=flops, transcendentals=0, bytes_accessed=bytes_accessed),
    )(x, w1, b1_row, w2_row, b2_s)

    # (1, B_pad) -> (B, 1); padded lanes (garbage rows) are dropped here.
    return out[0, :B][:, None]


def init_params(key, num_inputs, hidden_size):
    """PyTorch nn.Linear-style uniform(-1/sqrt(fan_in), 1/sqrt(fan_in)) init."""
    k1, k2, k3, k4 = jax.random.split(key, 4)
    bound1 = 1.0 / jnp.sqrt(jnp.float32(num_inputs))
    bound2 = 1.0 / jnp.sqrt(jnp.float32(hidden_size))
    # Stored transposed relative to PyTorch's (out_features, in_features).
    w1 = jax.random.uniform(k1, (num_inputs, hidden_size), jnp.float32, -bound1, bound1)
    b1 = jax.random.uniform(k2, (hidden_size,), jnp.float32, -bound1, bound1)
    w2 = jax.random.uniform(k3, (hidden_size, 1), jnp.float32, -bound2, bound2)
    b2 = jax.random.uniform(k4, (1,), jnp.float32, -bound2, bound2)
    return w1, b1, w2, b2


if __name__ == "__main__":
    num_inputs = 16
    hidden_size = 32
    batch = 200   # non-multiple of 128: exercises a 2-step grid + partial last tile

    key = jax.random.PRNGKey(0)
    kx, kp = jax.random.split(key)
    x = jax.random.normal(kx, (batch, num_inputs), jnp.float32)
    w1, b1, w2, b2 = init_params(kp, num_inputs, hidden_size)

    out = critic_net_forward(x, w1, b1, w2, b2)
    out = jax.block_until_ready(out)
    assert out.shape == (batch, 1)

    # Pure-f32 reference matching the PyTorch CriticNet forward.
    ref = jnp.maximum(x @ w1 + b1[None, :], 0.0) @ w2 + b2[None, :]
    max_err = float(jnp.max(jnp.abs(out - ref)))
    assert jnp.allclose(out, ref, atol=2e-2, rtol=2e-2), f"max abs err {max_err}"

    print("KERNEL_OK")
</pallas_src>

<mosaic_0001>
module attributes {stable_mosaic.version = 11 : i64} {
  func.func @critic_kernel(%arg0: i32, %arg1: memref<128x16xf32, #tpu.memory_space<vmem>>, %arg2: memref<16x32xf32, #tpu.memory_space<vmem>>, %arg3: memref<1x32xf32, #tpu.memory_space<vmem>>, %arg4: memref<1x32xf32, #tpu.memory_space<vmem>>, %arg5: memref<1x1xf32, #tpu.memory_space<smem>>, %arg6: memref<1x128xf32, #tpu.memory_space<vmem>>) attributes {dimension_semantics = [#tpu.dimension_semantics<parallel>], iteration_bounds = array<i64: 2>, scalar_prefetch = 0 : i64, scratch_operands = 0 : i64, tpu.core_type = #tpu.core_type<tc>, window_params = [{transform_indices = @transform_0, window_bounds = array<i64: 128, 16>}, {pipeline_mode = #tpu.pipeline_mode<synchronous>, transform_indices = @transform_1, window_bounds = array<i64: 16, 32>}, {pipeline_mode = #tpu.pipeline_mode<synchronous>, transform_indices = @transform_2, window_bounds = array<i64: 1, 32>}, {pipeline_mode = #tpu.pipeline_mode<synchronous>, transform_indices = @transform_3, window_bounds = array<i64: 1, 32>}, {transform_indices = @transform_4, window_bounds = array<i64: 1, 1>}, {transform_indices = @transform_5, window_bounds = array<i64: 1, 128>}]} {
    %c0 = arith.constant 0 : index
    %c0_0 = arith.constant 0 : index
    %0 = vector.load %arg1[%c0, %c0_0] : memref<128x16xf32, #tpu.memory_space<vmem>>, vector<128x16xf32>
    %c0_1 = arith.constant 0 : index
    %c0_2 = arith.constant 0 : index
    %1 = vector.load %arg2[%c0_1, %c0_2] : memref<16x32xf32, #tpu.memory_space<vmem>>, vector<16x32xf32>
    %cst = arith.constant dense<0.000000e+00> : vector<128x32xf32>
    %2 = tpu.matmul %0, %1, %cst {dimension_numbers = #tpu.dot_dimension_numbers<[1], [0], [0], [1], [0, 0, 1, 1], [], []>} : vector<128x16xf32>, vector<16x32xf32>, vector<128x32xf32> -> vector<128x32xf32>
    %c0_3 = arith.constant 0 : index
    %c0_4 = arith.constant 0 : index
    %3 = vector.load %arg3[%c0_3, %c0_4] : memref<1x32xf32, #tpu.memory_space<vmem>>, vector<1x32xf32>
    %4 = vector.broadcast %3 : vector<1x32xf32> to vector<128x32xf32>
    %5 = arith.addf %2, %4 : vector<128x32xf32>
    %cst_5 = arith.constant 0.000000e+00 : f32
    %6 = vector.broadcast %cst_5 : f32 to vector<128x32xf32>
    %7 = arith.maximumf %5, %6 : vector<128x32xf32>
    %c0_6 = arith.constant 0 : index
    %c0_7 = arith.constant 0 : index
    %8 = vector.load %arg4[%c0_6, %c0_7] : memref<1x32xf32, #tpu.memory_space<vmem>>, vector<1x32xf32>
    %cst_8 = arith.constant dense<0.000000e+00> : vector<1x128xf32>
    %9 = tpu.matmul %8, %7, %cst_8 {dimension_numbers = #tpu.dot_dimension_numbers<[1], [1], [0], [0], [0, 0, 1, 0], [], []>} : vector<1x32xf32>, vector<128x32xf32>, vector<1x128xf32> -> vector<1x128xf32>
    %c0_9 = arith.constant 0 : index
    %c0_10 = arith.constant 0 : index
    %10 = memref.load %arg5[%c0_9, %c0_10] : memref<1x1xf32, #tpu.memory_space<smem>>
    %11 = vector.broadcast %10 : f32 to vector<1x128xf32>
    %12 = arith.addf %9, %11 : vector<1x128xf32>
    %c0_11 = arith.constant 0 : index
    %c0_12 = arith.constant 0 : index
    %13 = vector.load %arg6[%c0_11, %c0_12] : memref<1x128xf32, #tpu.memory_space<vmem>>, vector<1x128xf32>
    tpu.vector_store %arg6[%c0_11, %c0_12], %12 {strides = array<i32>} : memref<1x128xf32, #tpu.memory_space<vmem>>, vector<1x128xf32>,
    return
  }
  func.func @transform_0(%arg0: i32) -> (i32, i32) {
    %c0_i32 = arith.constant 0 : i32
    %c0_i32_0 = arith.constant 0 : i32
    return %arg0, %c0_i32 : i32, i32
  }
  func.func @transform_1(%arg0: i32) -> (i32, i32) {
    %c0_i32 = arith.constant 0 : i32
    %c0_i32_0 = arith.constant 0 : i32
    %c0_i32_1 = arith.constant 0 : i32
    return %c0_i32, %c0_i32_0 : i32, i32
  }
  func.func @transform_2(%arg0: i32) -> (i32, i32) {
    %c0_i32 = arith.constant 0 : i32
    %c0_i32_0 = arith.constant 0 : i32
    %c0_i32_1 = arith.constant 0 : i32
    return %c0_i32, %c0_i32_0 : i32, i32
  }
  func.func @transform_3(%arg0: i32) -> (i32, i32) {
    %c0_i32 = arith.constant 0 : i32
    %c0_i32_0 = arith.constant 0 : i32
    %c0_i32_1 = arith.constant 0 : i32
    return %c0_i32, %c0_i32_0 : i32, i32
  }
  func.func @transform_4(%arg0: i32) -> (i32, i32) {
    %c0_i32 = arith.constant 0 : i32
    %c0_i32_0 = arith.constant 0 : i32
    %c0_i32_1 = arith.constant 0 : i32
    return %c0_i32, %c0_i32_0 : i32, i32
  }
  func.func @transform_5(%arg0: i32) -> (i32, i32) {
    %c0_i32 = arith.constant 0 : i32
    %c0_i32_0 = arith.constant 0 : i32
    return %c0_i32, %arg0 : i32, i32
  }
}

</mosaic_0001>

<llo_original>
// kernel: tpu_custom_call.1
$region0: #{tpu_custom_call.1}
  #allocation0 [shape = 'u32[]', space=smem, size = 0x4, offset = 0x4, fixed_abs, tag = 'smem constant byte address 0x4 - core index']
  #allocation1 [shape = 'u32[144,128]{1,0:T(1,128)}', space=vmem, size = 0x12000, scoped, tag = 'internal scratch']
  #allocation2 [shape = 'f32[1,1]{1,0:T(1,128)S(6)}', space=smem, size = 0x200, scoped, tag = 'scoped memory for tpu_custom_call.1']
  %s0 = inlined_call_operand.vmem [shape: f32[200,16], index: 0, kind: input, shape index: {}]
  %s1 = inlined_call_operand.vmem [shape: f32[16,32], index: 1, kind: input, shape index: {}]
  %s2 = inlined_call_operand.vmem [shape: f32[1,32], index: 2, kind: input, shape index: {}]
  %s3 = inlined_call_operand.vmem [shape: f32[1,32], index: 3, kind: input, shape index: {}]
  %s4 = inlined_call_operand.<no memory space> [shape: f32[1,1], index: 4, kind: input, shape index: {}]
  %s5 = inlined_call_operand.hbm [shape: f32[1,256], index: 5, kind: output, shape index: {}]
  %s6 = sld [smem:[#allocation0]]
  $region53: #{tpu_custom_call.1} parent=0
    _
  %s8 = ssub.s32 1, %s6
  %s9 = scalar_select 0, %s8, %s6
  %10 = sst [smem:[#allocation2]] %s4
  $region1: #{tpu_custom_call.1} parent=0
    #allocation3 [shape = 'u8[1024]{0}', space=vmem, size = 0x400, scoped, tag = 'output window, operand 0']
    #allocation4 [shape = 's32[2]{0}', space=sflag, size = 0x8, scoped, tag = 'scoped memory for tpu_custom_call.1']
    %11 = vsyncpa [#allocation4], 0
    %s12 = scalar_lea.sflag [#allocation4], 1
    %13 = vsyncpa %s12, 0
    loop: start=0, step=1, limit=4
    $region2: #{tpu_custom_call.1} parent=1 // loop_pre_header
      _
    $region3: #{tpu_custom_call.1} parent=1 // loop_header
      %s15 = sphi 0, %s19
      %p16 = scmp.ge.s32.totalorder %s15, 4
      %s25 = sphi 0, %s27
      %s28 = sphi 0, %s25
      %s29 = sphi 0, %s28
      %s45 = sphi 0, %s29
      %s49 = sphi 0, %s49
      %s51 = sphi 0, %s49
      %s52 = sphi 0, %s51
      %s66 = sphi 0, %s52
      %s70 = sphi 0, %s70
      %s72 = sphi 0, %s70
      %s73 = sphi 0, %s72
      %s87 = sphi 0, %s73
      %s91 = sphi 0, %s91
      %s93 = sphi 0, %s91
      %s94 = sphi 0, %s93
      %s108 = sphi 0, %s94
      %s112 = sphi 0, %s112
      %s114 = sphi 0, %s112
      %s115 = sphi 0, %s114
      %s129 = sphi 0, %s115
      %s135 = sphi 0, %s137
      %s138 = sphi 0, %s135
      %s139 = sphi 0, %s138
      %s155 = sphi 0, %s139
    $region4: #{tpu_custom_call.1} parent=1 // loop_header_branch
      %18 = sbr.rel (%p16) target = $region8
    $region5: #{tpu_custom_call.1} parent=1 // loop_body
      %s20 = ssub.s32 %s15, 1
      %s21 = ssub.s32 %s15, 2
      %s22 = sadd.s32 %s15, 1
      %s23 = ssub.s32 %s15, %s22
      %p24 = scmp.eq.s32.totalorder %s23, 0
      %s26 = sadd.s32 %s25, 1
      %s27 = scalar_select %p24, %s25, %s26
      %p30 = pneg %p24
      %p31 = scmp.eq.s32.totalorder %s15, 1
      %p32 = por %p30, %p31
      %p33 = scmp.ne.s32.totalorder %s25, %s28
      %p34 = scmp.eq.s32.totalorder %s15, 0
      %p35 = por %p33, %p34
      %p36 = scmp.ne.s32.totalorder %s25, %s28
      %p37 = scmp.eq.s32.totalorder %s20, 1
      %p38 = por %p36, %p37
      %p39 = scmp.ne.s32.totalorder %s28, %s29
      %p40 = scmp.eq.s32.totalorder %s20, 0
      %p41 = por %p39, %p40
      %p42 = scmp.ne.s32.totalorder %s28, %s29
      %p43 = scmp.eq.s32.totalorder %s21, 1
      %p44 = por %p42, %p43
      %p46 = scmp.ne.s32.totalorder %s29, %s45
      %p47 = scmp.eq.s32.totalorder %s21, 0
      %p48 = por %p46, %p47
      %s50 = sadd.s32 %s49, 1
      %p53 = scmp.eq.s32.totalorder %s15, 1
      %p54 = scmp.ne.s32.totalorder %s49, %s51
      %p55 = scmp.eq.s32.totalorder %s15, 0
      %p56 = por %p54, %p55
      %p57 = scmp.ne.s32.totalorder %s49, %s51
      %p58 = scmp.eq.s32.totalorder %s20, 1
      %p59 = por %p57, %p58
      %p60 = scmp.ne.s32.totalorder %s51, %s52
      %p61 = scmp.eq.s32.totalorder %s20, 0
      %p62 = por %p60, %p61
      %p63 = scmp.ne.s32.totalorder %s51, %s52
      %p64 = scmp.eq.s32.totalorder %s21, 1
      %p65 = por %p63, %p64
      %p67 = scmp.ne.s32.totalorder %s52, %s66
      %p68 = scmp.eq.s32.totalorder %s21, 0
      %p69 = por %p67, %p68
      %s71 = sadd.s32 %s70, 1
      %p74 = scmp.eq.s32.totalorder %s15, 1
      %p75 = scmp.ne.s32.totalorder %s70, %s72
      %p76 = scmp.eq.s32.totalorder %s15, 0
      %p77 = por %p75, %p76
      %p78 = scmp.ne.s32.totalorder %s70, %s72
      %p79 = scmp.eq.s32.totalorder %s20, 1
      %p80 = por %p78, %p79
      %p81 = scmp.ne.s32.totalorder %s72, %s73
      %p82 = scmp.eq.s32.totalorder %s20, 0
      %p83 = por %p81, %p82
      %p84 = scmp.ne.s32.totalorder %s72, %s73
      %p85 = scmp.eq.s32.totalorder %s21, 1
      %p86 = por %p84, %p85
      %p88 = scmp.ne.s32.totalorder %s73, %s87
      %p89 = scmp.eq.s32.totalorder %s21, 0
      %p90 = por %p88, %p89
      %s92 = sadd.s32 %s91, 1
      %p95 = scmp.eq.s32.totalorder %s15, 1
      %p96 = scmp.ne.s32.totalorder %s91, %s93
      %p97 = scmp.eq.s32.totalorder %s15, 0
      %p98 = por %p96, %p97
      %p99 = scmp.ne.s32.totalorder %s91, %s93
      %p100 = scmp.eq.s32.totalorder %s20, 1
      %p101 = por %p99, %p100
      %p102 = scmp.ne.s32.totalorder %s93, %s94
      %p103 = scmp.eq.s32.totalorder %s20, 0
      %p104 = por %p102, %p103
      %p105 = scmp.ne.s32.totalorder %s93, %s94
      %p106 = scmp.eq.s32.totalorder %s21, 1
      %p107 = por %p105, %p106
      %p109 = scmp.ne.s32.totalorder %s94, %s108
      %p110 = scmp.eq.s32.totalorder %s21, 0
      %p111 = por %p109, %p110
      %s113 = sadd.s32 %s112, 1
      %p116 = scmp.eq.s32.totalorder %s15, 1
      %p117 = scmp.ne.s32.totalorder %s112, %s114
      %p118 = scmp.eq.s32.totalorder %s15, 0
      %p119 = por %p117, %p118
      %p120 = scmp.ne.s32.totalorder %s112, %s114
      %p121 = scmp.eq.s32.totalorder %s20, 1
      %p122 = por %p120, %p121
      %p123 = scmp.ne.s32.totalorder %s114, %s115
      %p124 = scmp.eq.s32.totalorder %s20, 0
      %p125 = por %p123, %p124
      %p126 = scmp.ne.s32.totalorder %s114, %s115
      %p127 = scmp.eq.s32.totalorder %s21, 1
      %p128 = por %p126, %p127
      %p130 = scmp.ne.s32.totalorder %s115, %s129
      %p131 = scmp.eq.s32.totalorder %s21, 0
      %p132 = por %p130, %p131
      %s133 = ssub.s32 %s15, %s22
      %p134 = scmp.eq.s32.totalorder %s133, 0
      %s136 = sadd.s32 %s135, 1
      %s137 = scalar_select %p134, %s135, %s136
      %p140 = pneg %p134
      %p141 = scmp.eq.s32.totalorder %s15, 1
      %p142 = por %p140, %p141
      %p143 = scmp.ne.s32.totalorder %s135, %s138
      %p144 = scmp.eq.s32.totalorder %s15, 0
      %p145 = por %p143, %p144
      %p146 = scmp.ne.s32.totalorder %s135, %s138
      %p147 = scmp.eq.s32.totalorder %s20, 1
      %p148 = por %p146, %p147
      %p149 = scmp.ne.s32.totalorder %s138, %s139
      %p150 = scmp.eq.s32.totalorder %s20, 0
      %p151 = por %p149, %p150
      %p152 = scmp.ne.s32.totalorder %s138, %s139
      %p153 = scmp.eq.s32.totalorder %s21, 1
      %p154 = por %p152, %p153
      %p156 = scmp.ne.s32.totalorder %s139, %s155
      %p157 = scmp.eq.s32.totalorder %s21, 0
      %p158 = por %p156, %p157
      %p159 = scmp.le.s32.totalorder 1, %s15
      %p160 = scmp.lt.s32.totalorder %s15, 3
      %p161 = pnand %p159, %p160
      %p162 = pneg %p161
      // Predicated region
      $region9: #{tpu_custom_call.1} parent=5 // pred_check
        _
      $region10: #{tpu_custom_call.1} parent=5 // pred_check_branch
        %164 = sbr.rel (%p161) target = $region12
      $region11: #{tpu_custom_call.1} parent=5 // pred_region
        %s165 = ssub.s32 %s15, 1
        // Predicated region
        $region13: #{tpu_custom_call.1} parent=11 // pred_check
          %p166 = pneg %p62
        $region14: #{tpu_custom_call.1} parent=11 // pred_check_branch
          %168 = sbr.rel (%p166) target = $region16
        $region15: #{tpu_custom_call.1} parent=11 // pred_region
          _
        $region16: #{tpu_custom_call.1} parent=11 // pred_fallthru
          _
        // Predicated region
        $region17: #{tpu_custom_call.1} parent=11 // pred_check
          %p169 = pneg %p83
        $region18: #{tpu_custom_call.1} parent=11 // pred_check_branch
          %171 = sbr.rel (%p169) target = $region20
        $region19: #{tpu_custom_call.1} parent=11 // pred_region
          _
        $region20: #{tpu_custom_call.1} parent=11 // pred_fallthru
          _
        // Predicated region
        $region21: #{tpu_custom_call.1} parent=11 // pred_check
          %p172 = pneg %p104
        $region22: #{tpu_custom_call.1} parent=11 // pred_check_branch
          %174 = sbr.rel (%p172) target = $region24
        $region23: #{tpu_custom_call.1} parent=11 // pred_region
          _
        $region24: #{tpu_custom_call.1} parent=11 // pred_fallthru
          _
        // Predicated region
        $region25: #{tpu_custom_call.1} parent=11 // pred_check
          %p175 = pneg %p125
        $region26: #{tpu_custom_call.1} parent=11 // pred_check_branch
          %177 = sbr.rel (%p175) target = $region28
        $region27: #{tpu_custom_call.1} parent=11 // pred_region
          _
        $region28: #{tpu_custom_call.1} parent=11 // pred_fallthru
          _
      $region12: #{tpu_custom_call.1} parent=5 // pred_fallthru
        _
      %p178 = scmp.lt.s32.totalorder %s15, 2
      // Predicated region
      $region29: #{tpu_custom_call.1} parent=5 // pred_check
        %p179 = pneg %p178
      $region30: #{tpu_custom_call.1} parent=5 // pred_check_branch
        %181 = sbr.rel (%p179) target = $region32
      $region31: #{tpu_custom_call.1} parent=5 // pred_region
        // Predicated region
        $region33: #{tpu_custom_call.1} parent=31 // pred_check
          %p182 = pneg %p35
        $region34: #{tpu_custom_call.1} parent=31 // pred_check_branch
          %184 = sbr.rel (%p182) target = $region36
        $region35: #{tpu_custom_call.1} parent=31 // pred_region
          %s185 = smul.u32 16, %s15
          %s186 = ssub.s32 25, %s185
          %p187 = scmp.lt.s32.totalorder %s186, 16
          %s188 = scalar_select %p187, %s186, 16
          %s189 = smul.u32 128, %s188
          %p190 = scmp.lt.s32.totalorder %s185, 24
          %s191 = scalar_select %p190, %s185, 24
          %s192 = smul.addr %s191, 8
          %s193 = scalar_lea.vmem %s0, %s192
          %s194 = smul.u32 16, %s15
          %s195 = ssub.s32 25, %s194
          %p196 = scmp.lt.s32.totalorder %s195, 16
          %s197 = scalar_select %p196, %s195, 16
          %s198 = smul.u32 128, %s197
        $region36: #{tpu_custom_call.1} parent=31 // pred_fallthru
          _
      $region32: #{tpu_custom_call.1} parent=5 // pred_fallthru
        _
      %p199 = scmp.le.s32.totalorder 1, %s15
      %p200 = scmp.lt.s32.totalorder %s15, 3
      %p201 = pnand %p199, %p200
      %p202 = pneg %p201
      // Predicated region
      $region37: #{tpu_custom_call.1} parent=5 // pred_check
        _
      $region38: #{tpu_custom_call.1} parent=5 // pred_check_branch
        %204 = sbr.rel (%p201) target = $region40
      $region39: #{tpu_custom_call.1} parent=5 // pred_region
        %s205 = ssub.s32 %s15, 1
        %s206 = smul.u32 16, %s20
        %s207 = ssub.s32 25, %s206
        %p208 = scmp.lt.s32.totalorder %s207, 16
        %s209 = scalar_select %p208, %s207, 16
        %s210 = smul.u32 128, %s209
        %p211 = scmp.lt.s32.totalorder %s206, 24
        %s212 = scalar_select %p211, %s206, 24
        %s213 = smul.addr %s212, 8
        %s214 = scalar_lea.vmem %s0, %s213
        %p215 = pneg %p41
        %p216 = pneg %p38
        %p217 = pneg %p62
        %p218 = pneg %p59
        %p219 = pneg %p83
        %p220 = pneg %p80
        %p221 = pneg %p104
        %p222 = pneg %p101
        %p223 = pneg %p125
        %p224 = pneg %p122
        %p225 = pneg %p151
        %p226 = pneg %p148
        %s227 = sand.u32 %s138, 1
        %s228 = scalar_lea.sflag [#allocation4], %s227
        %s229 = sand.u32 %s138, 1
        %s230 = scalar_lea.vmem [#allocation3], %s229
        %s231 = smul.u32 16, %s20
        %s232 = ssub.s32 25, %s231
        %p233 = scmp.lt.s32.totalorder %s232, 16
        %s234 = scalar_select %p233, %s232, 16
        %s235 = smul.u32 128, %s234
        %p236 = scmp.lt.s32.totalorder %s231, 24
        %s237 = scalar_select %p236, %s231, 24
        %s238 = smul.addr %s237, 8
        %s239 = scalar_lea.vmem %s0, %s238
        %s240 = smul.u32 16, %s20
        %s241 = ssub.s32 25, %s240
        %p242 = scmp.lt.s32.totalorder %s241, 16
        %s243 = scalar_select %p242, %s241, 16
        %s244 = smul.u32 128, %s243
        %v245 = vld [vmem:[%s239] sm:$0xff]
        %v246 = vld [vmem:[%s239 + $0x8] sm:$0xff]
        %v247 = vld [vmem:[%s239 + $0x10] sm:$0xff]
        %v248 = vld [vmem:[%s239 + $0x18] sm:$0xff]
        %v249 = vld [vmem:[%s239 + $0x20] sm:$0xff]
        %v250 = vld [vmem:[%s239 + $0x28] sm:$0xff]
        %v251 = vld [vmem:[%s239 + $0x30] sm:$0xff]
        %v252 = vld [vmem:[%s239 + $0x38] sm:$0xff]
        %v253 = vld [vmem:[%s239 + $0x40] sm:$0xff]
        %v254 = vld [vmem:[%s239 + $0x48] sm:$0xff]
        %v255 = vld [vmem:[%s239 + $0x50] sm:$0xff]
        %v256 = vld [vmem:[%s239 + $0x58] sm:$0xff]
        %v257 = vld [vmem:[%s239 + $0x60] sm:$0xff]
        %v258 = vld [vmem:[%s239 + $0x68] sm:$0xff]
        %v259 = vld [vmem:[%s239 + $0x70] sm:$0xff]
        %v260 = vld [vmem:[%s239 + $0x78] sm:$0xff]
        %v261 = vld [vmem:[%s1] sm:$0xff]
        %v262 = vld [vmem:[%s1 + $0x8] sm:$0xff]
        %v263 = vld [vmem:[%s2] sm:$0x1]
        %v265 = vlaneseq
        %v266 = vshrl.u32 %v265, 7
        %v267 = vsub.s32 0, %v266
        %v268 = vrot.slane %v263, %v267
        %vm270 = vcmask 130048
        %v272 = vsel %vm270, %v245, 0
        %v275 = vsel %vm270, %v246, 0
        %v278 = vsel %vm270, %v247, 0
        %v281 = vsel %vm270, %v248, 0
        %v284 = vsel %vm270, %v249, 0
        %v287 = vsel %vm270, %v250, 0
        %v290 = vsel %vm270, %v251, 0
        %v293 = vsel %vm270, %v252, 0
        %v296 = vsel %vm270, %v253, 0
        %v299 = vsel %vm270, %v254, 0
        %v302 = vsel %vm270, %v255, 0
        %v305 = vsel %vm270, %v256, 0
        %v308 = vsel %vm270, %v257, 0
        %v311 = vsel %vm270, %v258, 0
        %v314 = vsel %vm270, %v259, 0
        %v317 = vsel %vm270, %v260, 0
        %319 = vmatprep.subr.mxu0 0.0
        %320 = vmatpush1.msra.mxu0 %v261
        %321 = vmatprep.subr.mxu0 0.0
        %322 = vmatpush1.msra.mxu0 %v262
        %323 = vmatprep.subr.mxu0 0.0
        %324 = vmatpush1.msra.mxu0 0.0
        %325 = vmatprep.subr.mxu0 0.0
        %326 = vmatpush1.msra.mxu0 0.0
        %327 = vmatprep.subr.mxu0 0.0
        %328 = vmatpush1.msra.mxu0 0.0
        %329 = vmatprep.subr.mxu0 0.0
        %330 = vmatpush1.msra.mxu0 0.0
        %331 = vmatprep.subr.mxu0 0.0
        %332 = vmatpush1.msra.mxu0 0.0
        %333 = vmatprep.subr.mxu0 0.0
        %334 = vmatpush1.msra.mxu0 0.0
        %335 = vmatprep.subr.mxu0 0.0
        %336 = vmatpush1.msra.mxu0 0.0
        %337 = vmatprep.subr.mxu0 0.0
        %338 = vmatpush1.msra.mxu0 0.0
        %339 = vmatprep.subr.mxu0 0.0
        %340 = vmatpush1.msra.mxu0 0.0
        %341 = vmatprep.subr.mxu0 0.0
        %342 = vmatpush1.msra.mxu0 0.0
        %343 = vmatprep.subr.mxu0 0.0
        %344 = vmatpush1.msra.mxu0 0.0
        %345 = vmatprep.subr.mxu0 0.0
        %346 = vmatpush1.msra.mxu0 0.0
        %347 = vmatprep.subr.mxu0 0.0
        %348 = vmatpush1.msra.mxu0 0.0
        %349 = vmatprep.subr.mxu0 0.0
        %350 = vmatpush1.msra.mxu0 0.0
        %351 = vmatprep.subr.mxu0 0.0
        %352 = vmatpush1.msra.mxu0 0.0
        %353 = vmatprep.subr.mxu0 0.0
        %354 = vmatpush1.msra.mxu0 0.0
        %355 = vmatprep.subr.mxu0 0.0
        %356 = vmatpush1.msra.mxu0 0.0
        %357 = vmatprep.subr.mxu0 0.0
        %358 = vmatpush1.msra.mxu0 0.0
        %359 = vmatprep.subr.mxu0 0.0
        %360 = vmatpush1.msra.mxu0 0.0
        %361 = vmatprep.subr.mxu0 0.0
        %362 = vmatpush1.msra.mxu0 0.0
        %363 = vmatprep.subr.mxu0 0.0
        %364 = vmatpush1.msra.mxu0 0.0
        %365 = vmatprep.subr.mxu0 0.0
        %366 = vmatpush1.msra.mxu0 0.0
        %367 = vmatprep.subr.mxu0 0.0
        %368 = vmatpush1.msra.mxu0 0.0
        %369 = vmatprep.subr.mxu0 0.0
        %370 = vmatpush1.msra.mxu0 0.0
        %371 = vmatprep.subr.mxu0 0.0
        %372 = vmatpush1.msra.mxu0 0.0
        %373 = vmatprep.subr.mxu0 0.0
        %374 = vmatpush1.msra.mxu0 0.0
        %375 = vmatprep.subr.mxu0 0.0
        %376 = vmatpush1.msra.mxu0 0.0
        %377 = vmatprep.subr.mxu0 0.0
        %378 = vmatpush1.msra.mxu0 0.0
        %379 = vmatprep.subr.mxu0 0.0
        %380 = vmatpush1.msra.mxu0 0.0
        %381 = vmatprep.subr.mxu0 0.0
        %382 = vmatpush1.msra.mxu0 0.0
        %383 = vmatprep.mubr.f32.mxu0 0.0
        %384 = vmatmul.mubr.f32.gmra.mrb[0].mxu0 %v272
        %v385 = vpop.f32.mrb[0].mxu0
        %v386 = vadd.f32 %v268, %v385
        %v387 = vpop.f32.mrb[0].mxu0
        %388 = vmatprep.mubr.f32.mxu0 0.0
        %389 = vmatmul.mubr.f32.gmra.mrb[0].mxu0 %v275
        %v390 = vpop.f32.mrb[0].mxu0
        %v391 = vadd.f32 %v268, %v390
        %v392 = vpop.f32.mrb[0].mxu0
        %393 = vmatprep.mubr.f32.mxu0 0.0
        %394 = vmatmul.mubr.f32.gmra.mrb[0].mxu0 %v278
        %v395 = vpop.f32.mrb[0].mxu0
        %v396 = vadd.f32 %v268, %v395
        %v397 = vpop.f32.mrb[0].mxu0
        %398 = vmatprep.mubr.f32.mxu0 0.0
        %399 = vmatmul.mubr.f32.gmra.mrb[0].mxu0 %v281
        %v400 = vpop.f32.mrb[0].mxu0
        %v401 = vadd.f32 %v268, %v400
        %v402 = vpop.f32.mrb[0].mxu0
        %403 = vmatprep.mubr.f32.mxu0 0.0
        %404 = vmatmul.mubr.f32.gmra.mrb[0].mxu0 %v284
        %v405 = vpop.f32.mrb[0].mxu0
        %v406 = vadd.f32 %v268, %v405
        %v407 = vpop.f32.mrb[0].mxu0
        %408 = vmatprep.mubr.f32.mxu0 0.0
        %409 = vmatmul.mubr.f32.gmra.mrb[0].mxu0 %v287
        %v410 = vpop.f32.mrb[0].mxu0
        %v411 = vadd.f32 %v268, %v410
        %v412 = vpop.f32.mrb[0].mxu0
        %413 = vmatprep.mubr.f32.mxu0 0.0
        %414 = vmatmul.mubr.f32.gmra.mrb[0].mxu0 %v290
        %v415 = vpop.f32.mrb[0].mxu0
        %v416 = vadd.f32 %v268, %v415
        %v417 = vpop.f32.mrb[0].mxu0
        %418 = vmatprep.mubr.f32.mxu0 0.0
        %419 = vmatmul.mubr.f32.gmra.mrb[0].mxu0 %v293
        %v420 = vpop.f32.mrb[0].mxu0
        %v421 = vadd.f32 %v268, %v420
        %v422 = vpop.f32.mrb[0].mxu0
        %423 = vmatprep.mubr.f32.mxu0 0.0
        %424 = vmatmul.mubr.f32.gmra.mrb[0].mxu0 %v296
        %v425 = vpop.f32.mrb[0].mxu0
        %v426 = vadd.f32 %v268, %v425
        %v427 = vpop.f32.mrb[0].mxu0
        %428 = vmatprep.mubr.f32.mxu0 0.0
        %429 = vmatmul.mubr.f32.gmra.mrb[0].mxu0 %v299
        %v430 = vpop.f32.mrb[0].mxu0
        %v431 = vadd.f32 %v268, %v430
        %v432 = vpop.f32.mrb[0].mxu0
        %433 = vmatprep.mubr.f32.mxu0 0.0
        %434 = vmatmul.mubr.f32.gmra.mrb[0].mxu0 %v302
        %v435 = vpop.f32.mrb[0].mxu0
        %v436 = vadd.f32 %v268, %v435
        %v437 = vpop.f32.mrb[0].mxu0
        %438 = vmatprep.mubr.f32.mxu0 0.0
        %439 = vmatmul.mubr.f32.gmra.mrb[0].mxu0 %v305
        %v440 = vpop.f32.mrb[0].mxu0
        %v441 = vadd.f32 %v268, %v440
        %v442 = vpop.f32.mrb[0].mxu0
        %443 = vmatprep.mubr.f32.mxu0 0.0
        %444 = vmatmul.mubr.f32.gmra.mrb[0].mxu0 %v308
        %v445 = vpop.f32.mrb[0].mxu0
        %v446 = vadd.f32 %v268, %v445
        %v447 = vpop.f32.mrb[0].mxu0
        %448 = vmatprep.mubr.f32.mxu0 0.0
        %449 = vmatmul.mubr.f32.gmra.mrb[0].mxu0 %v311
        %v450 = vpop.f32.mrb[0].mxu0
        %v451 = vadd.f32 %v268, %v450
        %v452 = vpop.f32.mrb[0].mxu0
        %453 = vmatprep.mubr.f32.mxu0 0.0
        %454 = vmatmul.mubr.f32.gmra.mrb[0].mxu0 %v314
        %v455 = vpop.f32.mrb[0].mxu0
        %v456 = vadd.f32 %v268, %v455
        %v457 = vpop.f32.mrb[0].mxu0
        %458 = vmatprep.mubr.f32.mxu0 0.0
        %459 = vmatmul.mubr.f32.gmra.mrb[0].mxu0 %v317
        %v460 = vpop.f32.mrb[0].mxu0
        %v461 = vadd.f32 %v268, %v460
        %v462 = vpop.f32.mrb[0].mxu0
        %463 = vdwg.mxu0
        %v464 = vmax.f32 %v386, 0.0
        %v465 = vmax.f32 %v391, 0.0
        %v466 = vmax.f32 %v396, 0.0
        %v467 = vmax.f32 %v401, 0.0
        %v468 = vmax.f32 %v406, 0.0
        %v469 = vmax.f32 %v411, 0.0
        %v470 = vmax.f32 %v416, 0.0
        %v471 = vmax.f32 %v421, 0.0
        %v472 = vmax.f32 %v426, 0.0
        %v473 = vmax.f32 %v431, 0.0
        %v474 = vmax.f32 %v436, 0.0
        %v475 = vmax.f32 %v441, 0.0
        %v476 = vmax.f32 %v446, 0.0
        %v477 = vmax.f32 %v451, 0.0
        %v478 = vmax.f32 %v456, 0.0
        %v479 = vmax.f32 %v461, 0.0
        %v480 = vld [vmem:[%s3] sm:$0x1]
        %s481 = sld [smem:[#allocation2]]
        %v482 = vstv %s481
        %vm483 = vcmask 261120
        %v485 = vsel %vm483, %v480, 0
        %v488 = vsel %vm483, %v464, 0
        %v491 = vsel %vm483, %v465, 0
        %v494 = vsel %vm483, %v466, 0
        %v497 = vsel %vm483, %v467, 0
        %v500 = vsel %vm483, %v468, 0
        %v503 = vsel %vm483, %v469, 0
        %v506 = vsel %vm483, %v470, 0
        %v509 = vsel %vm483, %v471, 0
        %v512 = vsel %vm483, %v472, 0
        %v515 = vsel %vm483, %v473, 0
        %v518 = vsel %vm483, %v474, 0
        %v521 = vsel %vm483, %v475, 0
        %v524 = vsel %vm483, %v476, 0
        %v527 = vsel %vm483, %v477, 0
        %v530 = vsel %vm483, %v478, 0
        %v533 = vsel %vm483, %v479, 0
        %535 = vmatprep.subr.mxu0 0.0
        %536 = vmatpush1.xpose.msra.mxu0 %v488
        %537 = vmatprep.subr.mxu0 0.0
        %538 = vmatpush1.xpose.msra.mxu0 %v491
        %539 = vmatprep.subr.mxu0 0.0
        %540 = vmatpush1.xpose.msra.mxu0 %v494
        %541 = vmatprep.subr.mxu0 0.0
        %542 = vmatpush1.xpose.msra.mxu0 %v497
        %543 = vmatprep.subr.mxu0 0.0
        %544 = vmatpush1.xpose.msra.mxu0 %v500
        %545 = vmatprep.subr.mxu0 0.0
        %546 = vmatpush1.xpose.msra.mxu0 %v503
        %547 = vmatprep.subr.mxu0 0.0
        %548 = vmatpush1.xpose.msra.mxu0 %v506
        %549 = vmatprep.subr.mxu0 0.0
        %550 = vmatpush1.xpose.msra.mxu0 %v509
        %551 = vmatprep.subr.mxu0 0.0
        %552 = vmatpush1.xpose.msra.mxu0 %v512
        %553 = vmatprep.subr.mxu0 0.0
        %554 = vmatpush1.xpose.msra.mxu0 %v515
        %555 = vmatprep.subr.mxu0 0.0
        %556 = vmatpush1.xpose.msra.mxu0 %v518
        %557 = vmatprep.subr.mxu0 0.0
        %558 = vmatpush1.xpose.msra.mxu0 %v521
        %559 = vmatprep.subr.mxu0 0.0
        %560 = vmatpush1.xpose.msra.mxu0 %v524
        %561 = vmatprep.subr.mxu0 0.0
        %562 = vmatpush1.xpose.msra.mxu0 %v527
        %563 = vmatprep.subr.mxu0 0.0
        %564 = vmatpush1.xpose.msra.mxu0 %v530
        %565 = vmatprep.subr.mxu0 0.0
        %566 = vmatpush1.xpose.msra.mxu0 %v533
        %567 = vmatprep.subr.mxu0 0.0
        %568 = vmatpush1.xpose.msra.mxu0 0.0
        %569 = vmatprep.subr.mxu0 0.0
        %570 = vmatpush1.xpose.msra.mxu0 0.0
        %571 = vmatprep.subr.mxu0 0.0
        %572 = vmatpush1.xpose.msra.mxu0 0.0
        %573 = vmatprep.subr.mxu0 0.0
        %574 = vmatpush1.xpose.msra.mxu0 0.0
        %575 = vmatprep.subr.mxu0 0.0
        %576 = vmatpush1.xpose.msra.mxu0 0.0
        %577 = vmatprep.subr.mxu0 0.0
        %578 = vmatpush1.xpose.msra.mxu0 0.0
        %579 = vmatprep.subr.mxu0 0.0
        %580 = vmatpush1.xpose.msra.mxu0 0.0
        %581 = vmatprep.subr.mxu0 0.0
        %582 = vmatpush1.xpose.msra.mxu0 0.0
        %583 = vmatprep.subr.mxu0 0.0
        %584 = vmatpush1.xpose.msra.mxu0 0.0
        %585 = vmatprep.subr.mxu0 0.0
        %586 = vmatpush1.xpose.msra.mxu0 0.0
        %587 = vmatprep.subr.mxu0 0.0
        %588 = vmatpush1.xpose.msra.mxu0 0.0
        %589 = vmatprep.subr.mxu0 0.0
        %590 = vmatpush1.xpose.msra.mxu0 0.0
        %591 = vmatprep.subr.mxu0 0.0
        %592 = vmatpush1.xpose.msra.mxu0 0.0
        %593 = vmatprep.subr.mxu0 0.0
        %594 = vmatpush1.xpose.msra.mxu0 0.0
        %595 = vmatprep.subr.mxu0 0.0
        %596 = vmatpush1.xpose.msra.mxu0 0.0
        %597 = vmatprep.subr.mxu0 0.0
        %598 = vmatpush1.xpose.msra.mxu0 0.0
        %599 = vmatprep.mubr.f32.mxu0 0.0
        %600 = vmatmul.mubr.f32.gmra.mrb[0].mxu0 %v485
        %v601 = vpop.f32.mrb[0].mxu0
        %v602 = vadd.f32 %v482, %v601
        %v603 = vpop.f32.mrb[0].mxu0
        %604 = vdwg.mxu0
        %605 = vst [vmem:[%s230] sm:$0x1] %v602
        %s606 = sand.u32 %s138, 1
        %s607 = scalar_lea.sflag [#allocation4], %s606
        %s608 = sand.u32 %s138, 1
        %s609 = scalar_lea.vmem [#allocation3], %s608
        // Predicated region
        $region41: #{tpu_custom_call.1} parent=39 // pred_check
          %p610 = pneg %p148
        $region42: #{tpu_custom_call.1} parent=39 // pred_check_branch
          %612 = sbr.rel (%p610) target = $region44
        $region43: #{tpu_custom_call.1} parent=39 // pred_region
          %s614 = ssub.s32 16, 16
          %615 = vsyncadd %s607, %s614
          %s616 = smul.addr %s20, 16
          %s617 = scalar_lea.hbm %s5, %s616
          %s619 = sshll.u32 %s609, 4
          %s620 = int_to_ptr.vmem [resolvable:$true] %s619
          %622 = dma.vmem_to_hbm [thread:$0]  %s620, 16, %s617, %s607
        $region44: #{tpu_custom_call.1} parent=39 // pred_fallthru
          _
      $region40: #{tpu_custom_call.1} parent=5 // pred_fallthru
        _
      %p623 = scmp.le.s32.totalorder 2, %s15
      // Predicated region
      $region45: #{tpu_custom_call.1} parent=5 // pred_check
        %p624 = pneg %p623
      $region46: #{tpu_custom_call.1} parent=5 // pred_check_branch
        %626 = sbr.rel (%p624) target = $region48
      $region47: #{tpu_custom_call.1} parent=5 // pred_region
        %s627 = ssub.s32 %s15, 2
        // Predicated region
        $region49: #{tpu_custom_call.1} parent=47 // pred_check
          %p628 = pneg %p154
        $region50: #{tpu_custom_call.1} parent=47 // pred_check_branch
          %630 = sbr.rel (%p628) target = $region52
        $region51: #{tpu_custom_call.1} parent=47 // pred_region
          %s631 = sand.u32 %s139, 1
          %s632 = scalar_lea.sflag [#allocation4], %s631
          %s633 = sand.u32 %s139, 1
          %s634 = scalar_lea.vmem [#allocation3], %s633
          %635 = dma.done %s632, 16
        $region52: #{tpu_custom_call.1} parent=47 // pred_fallthru
          _
      $region48: #{tpu_custom_call.1} parent=5 // pred_fallthru
        _
    $region6: #{tpu_custom_call.1} parent=1 // loop_footer
      %s19 = sadd.s32 1, %s15
    $region7: #{tpu_custom_call.1} parent=1 // loop_footer_branch
      %14 = sbr.rel target = $region3
    $region8: #{tpu_custom_call.1} parent=1 // loop_exit
      _
    %636 = vsyncpa [#allocation4], 1
    %s637 = scalar_lea.sflag [#allocation4], 1
    %638 = vsyncpa %s637, 1

</llo_original>
